<compile_context>
chip_gen: v6e
topology: v6e:2x2x1
jax: 0.10.0
libtpu: 0.0.40
codegen_flags: <defaults>
</compile_context>

<pallas_src>
import math

import jax
import jax.numpy as jnp
from jax.experimental import pallas as pl
from jax.experimental.pallas import tpu as pltpu

SUBLANE = 8  # f32 sublane count


def _round_up(n, m):
    return ((n + m - 1) // m) * m


# ----------------------------- Pallas kernel ------------------------------- #
def _embed_kernel(x_ref, w1_ref, b1_ref, w2_ref, b2_ref, w3_ref, b3_ref, o_ref):
    # Cast the activation tile in-kernel (no wrapper-side astype / HBM pass).
    x = x_ref[...].astype(w1_ref.dtype)
    # Encoder MLP layer 1: Linear + ReLU (MXU matmul, f32 accumulate + epilogue).
    h = jnp.dot(x, w1_ref[...], preferred_element_type=jnp.float32)
    h = jnp.maximum(h + b1_ref[...], 0.0)
    # Encoder MLP layer 2: Linear + ReLU.
    h = jnp.dot(h.astype(w2_ref.dtype), w2_ref[...],
                preferred_element_type=jnp.float32)
    h = jnp.maximum(h + b2_ref[...], 0.0)
    # out_nn: Linear (no activation).
    y = jnp.dot(h.astype(w3_ref.dtype), w3_ref[...],
                preferred_element_type=jnp.float32)
    o_ref[...] = (y + b3_ref[...]).astype(o_ref.dtype)


# ------------------------------ host wrappers ------------------------------ #
def prepare_params(params, compute_dtype=jnp.float32):
    """One-time weight/bias preparation, hoisted out of the per-call path.

    Weights go to compute_dtype (bf16 halves weight DMA bytes and is MXU-native
    on v5e/v6e/v7x); biases stay f32 since the epilogue is f32 everywhere.
    """
    w1, b1, w2, b2, w3, b3 = params
    cast_w = lambda w: jnp.asarray(w, compute_dtype)
    cast_b = lambda b: jnp.asarray(b, jnp.float32).reshape(1, -1)
    return (cast_w(w1), cast_b(b1), cast_w(w2), cast_b(b2),
            cast_w(w3), cast_b(b3))


def _choose_tm(M, tm):
    """Row tile: large (amortize grid-step overhead) but >=2 grid steps when
    possible so the 'parallel' axis shards across both v7x TensorCores."""
    if M <= SUBLANE:
        return M                      # full-dim block, single step
    tm = max(SUBLANE, min(_round_up(tm, SUBLANE), _round_up(M, SUBLANE)))
    if pl.cdiv(M, tm) < 2:
        tm = max(SUBLANE, _round_up(pl.cdiv(M, 2), SUBLANE))
    return tm


def input_embedding_forward(x_flat, prepared, *, tm=1024):
    """x_flat: (B*S, obs_dim) float32.  prepared: output of prepare_params.
    Returns (B*S, d_model) in x_flat.dtype."""
    w1, b1, w2, b2, w3, b3 = prepared
    M, obs_dim = x_flat.shape
    h1, h2, d_model = w1.shape[1], w2.shape[1], w3.shape[1]

    tm = _choose_tm(M, tm)
    grid = (pl.cdiv(M, tm),)          # ragged last block: rows are independent,
                                      # OOB output rows are masked on store.

    # Weights / biases are tiny: full tensors resident every step (constant
    # block index). Feature dims stay unpadded — full-array-dim blocks are
    # legal and the kernel is DMA-bound, not MXU-bound.
    full = lambda shape: pl.BlockSpec(shape, lambda i: (0, 0))

    out = pl.pallas_call(
        _embed_kernel,
        out_shape=jax.ShapeDtypeStruct((M, d_model), x_flat.dtype),
        grid_spec=pltpu.PrefetchScalarGridSpec(
            num_scalar_prefetch=0,
            grid=grid,
            in_specs=[
                pl.BlockSpec((tm, obs_dim), lambda i: (i, 0)),   # x tile
                full((obs_dim, h1)), full((1, h1)),              # encoder layer 1
                full((h1, h2)), full((1, h2)),                   # encoder layer 2
                full((h2, d_model)), full((1, d_model)),         # out_nn
            ],
            out_specs=pl.BlockSpec((tm, d_model), lambda i: (i, 0)),
        ),
        compiler_params=pltpu.CompilerParams(
            dimension_semantics=("parallel",)),
    )(x_flat, w1, b1, w2, b2, w3, b3)
    return out


# ------------------------ deterministic parameter init ---------------------- #
def _linear_init(key, fan_in, fan_out):
    # Mimic PyTorch nn.Linear default init: U(-1/sqrt(fan_in), 1/sqrt(fan_in)).
    kw, kb = jax.random.split(key)
    bound = 1.0 / math.sqrt(fan_in)
    w = jax.random.uniform(kw, (fan_in, fan_out), jnp.float32, -bound, bound)
    b = jax.random.uniform(kb, (1, fan_out), jnp.float32, -bound, bound)
    return w, b


def make_params(key, obs_dim, units, d_model):
    k1, k2, k3 = jax.random.split(key, 3)
    w1, b1 = _linear_init(k1, obs_dim, units[0])
    w2, b2 = _linear_init(k2, units[0], units[1])
    w3, b3 = _linear_init(k3, units[1], d_model)
    return (w1, b1, w2, b2, w3, b3)


def reference_forward(x_flat, params):
    w1, b1, w2, b2, w3, b3 = params
    h = jnp.maximum(x_flat @ w1 + b1, 0.0)
    h = jnp.maximum(h @ w2 + b2, 0.0)
    return h @ w3 + b3


# ---------------------------------- main ------------------------------------ #
if __name__ == "__main__":
    # Small shapes consistent with the module's forward:
    batch, seq_len, obs_dim = 2, 8, 32
    encoder_units = (64, 32)       # config['encoder']['network'][0]['mlp']['units']
    d_model = 32

    key = jax.random.PRNGKey(0)
    k_obs, k_par = jax.random.split(key)

    # obs dict: {"linear": (batch, seq_len, obs_dim)}
    obs_linear = jax.random.normal(k_obs, (batch, seq_len, obs_dim), jnp.float32)
    params = make_params(k_par, obs_dim, encoder_units, d_model)

    # Glue (reshape) in plain JAX, as in the PyTorch module.
    x_flat = obs_linear.reshape(batch * seq_len, obs_dim)
    ref = reference_forward(x_flat, params).reshape(batch, seq_len, d_model)

    # f32 path (exact vs reference).
    prepared_f32 = prepare_params(params, jnp.float32)
    out = input_embedding_forward(x_flat, prepared_f32).reshape(
        batch, seq_len, d_model)
    jax.block_until_ready(out)
    assert out.shape == (batch, seq_len, d_model)
    assert jnp.allclose(out, ref, atol=1e-5, rtol=1e-5)

    # bf16-operand path (MXU-native on v5e/v6e/v7x; f32 accumulate + epilogue).
    # Note: x is cast to bf16 in-kernel before the first matmul, so input
    # mantissa is reduced — fine for embeddings, hence the loose tolerance.
    prepared_bf16 = prepare_params(params, jnp.bfloat16)
    out_bf16 = input_embedding_forward(x_flat, prepared_bf16).reshape(
        batch, seq_len, d_model)
    jax.block_until_ready(out_bf16)
    assert jnp.allclose(out_bf16, ref, atol=1e-1, rtol=1e-1)

    print("KERNEL_OK")
</pallas_src>

<mosaic_0001>
module attributes {stable_mosaic.version = 11 : i64} {
  func.func @_embed_kernel(%arg0: i32, %arg1: memref<8x32xf32, #tpu.memory_space<vmem>>, %arg2: memref<32x64xf32, #tpu.memory_space<vmem>>, %arg3: memref<1x64xf32, #tpu.memory_space<vmem>>, %arg4: memref<64x32xf32, #tpu.memory_space<vmem>>, %arg5: memref<1x32xf32, #tpu.memory_space<vmem>>, %arg6: memref<32x32xf32, #tpu.memory_space<vmem>>, %arg7: memref<1x32xf32, #tpu.memory_space<vmem>>, %arg8: memref<8x32xf32, #tpu.memory_space<vmem>>) attributes {dimension_semantics = [#tpu.dimension_semantics<parallel>], iteration_bounds = array<i64: 2>, scalar_prefetch = 0 : i64, scratch_operands = 0 : i64, tpu.core_type = #tpu.core_type<tc>, window_params = [{transform_indices = @transform_0, window_bounds = array<i64: 8, 32>}, {pipeline_mode = #tpu.pipeline_mode<synchronous>, transform_indices = @transform_1, window_bounds = array<i64: 32, 64>}, {pipeline_mode = #tpu.pipeline_mode<synchronous>, transform_indices = @transform_2, window_bounds = array<i64: 1, 64>}, {pipeline_mode = #tpu.pipeline_mode<synchronous>, transform_indices = @transform_3, window_bounds = array<i64: 64, 32>}, {pipeline_mode = #tpu.pipeline_mode<synchronous>, transform_indices = @transform_4, window_bounds = array<i64: 1, 32>}, {pipeline_mode = #tpu.pipeline_mode<synchronous>, transform_indices = @transform_5, window_bounds = array<i64: 32, 32>}, {pipeline_mode = #tpu.pipeline_mode<synchronous>, transform_indices = @transform_6, window_bounds = array<i64: 1, 32>}, {transform_indices = @transform_7, window_bounds = array<i64: 8, 32>}]} {
    %c0 = arith.constant 0 : index
    %c0_0 = arith.constant 0 : index
    %0 = vector.load %arg1[%c0, %c0_0] : memref<8x32xf32, #tpu.memory_space<vmem>>, vector<8x32xf32>
    %c0_1 = arith.constant 0 : index
    %c0_2 = arith.constant 0 : index
    %1 = vector.load %arg2[%c0_1, %c0_2] : memref<32x64xf32, #tpu.memory_space<vmem>>, vector<32x64xf32>
    %cst = arith.constant dense<0.000000e+00> : vector<8x64xf32>
    %2 = tpu.matmul %0, %1, %cst {dimension_numbers = #tpu.dot_dimension_numbers<[1], [0], [0], [1], [0, 0, 1, 1], [], []>} : vector<8x32xf32>, vector<32x64xf32>, vector<8x64xf32> -> vector<8x64xf32>
    %c0_3 = arith.constant 0 : index
    %c0_4 = arith.constant 0 : index
    %3 = vector.load %arg3[%c0_3, %c0_4] : memref<1x64xf32, #tpu.memory_space<vmem>>, vector<1x64xf32>
    %4 = vector.broadcast %3 : vector<1x64xf32> to vector<8x64xf32>
    %5 = arith.addf %2, %4 : vector<8x64xf32>
    %cst_5 = arith.constant 0.000000e+00 : f32
    %6 = vector.broadcast %cst_5 : f32 to vector<8x64xf32>
    %7 = arith.maximumf %5, %6 : vector<8x64xf32>
    %c0_6 = arith.constant 0 : index
    %c0_7 = arith.constant 0 : index
    %8 = vector.load %arg4[%c0_6, %c0_7] : memref<64x32xf32, #tpu.memory_space<vmem>>, vector<64x32xf32>
    %cst_8 = arith.constant dense<0.000000e+00> : vector<8x32xf32>
    %9 = tpu.matmul %7, %8, %cst_8 {dimension_numbers = #tpu.dot_dimension_numbers<[1], [0], [0], [1], [0, 0, 1, 1], [], []>} : vector<8x64xf32>, vector<64x32xf32>, vector<8x32xf32> -> vector<8x32xf32>
    %c0_9 = arith.constant 0 : index
    %c0_10 = arith.constant 0 : index
    %10 = vector.load %arg5[%c0_9, %c0_10] : memref<1x32xf32, #tpu.memory_space<vmem>>, vector<1x32xf32>
    %11 = vector.broadcast %10 : vector<1x32xf32> to vector<8x32xf32>
    %12 = arith.addf %9, %11 : vector<8x32xf32>
    %cst_11 = arith.constant 0.000000e+00 : f32
    %13 = vector.broadcast %cst_11 : f32 to vector<8x32xf32>
    %14 = arith.maximumf %12, %13 : vector<8x32xf32>
    %c0_12 = arith.constant 0 : index
    %c0_13 = arith.constant 0 : index
    %15 = vector.load %arg6[%c0_12, %c0_13] : memref<32x32xf32, #tpu.memory_space<vmem>>, vector<32x32xf32>
    %cst_14 = arith.constant dense<0.000000e+00> : vector<8x32xf32>
    %16 = tpu.matmul %14, %15, %cst_14 {dimension_numbers = #tpu.dot_dimension_numbers<[1], [0], [0], [1], [0, 0, 1, 1], [], []>} : vector<8x32xf32>, vector<32x32xf32>, vector<8x32xf32> -> vector<8x32xf32>
    %c0_15 = arith.constant 0 : index
    %c0_16 = arith.constant 0 : index
    %17 = vector.load %arg7[%c0_15, %c0_16] : memref<1x32xf32, #tpu.memory_space<vmem>>, vector<1x32xf32>
    %18 = vector.broadcast %17 : vector<1x32xf32> to vector<8x32xf32>
    %19 = arith.addf %16, %18 : vector<8x32xf32>
    %c0_17 = arith.constant 0 : index
    %c0_18 = arith.constant 0 : index
    %20 = vector.load %arg8[%c0_17, %c0_18] : memref<8x32xf32, #tpu.memory_space<vmem>>, vector<8x32xf32>
    tpu.vector_store %arg8[%c0_17, %c0_18], %19 {strides = array<i32>} : memref<8x32xf32, #tpu.memory_space<vmem>>, vector<8x32xf32>,
    return
  }
  func.func @transform_0(%arg0: i32) -> (i32, i32) {
    %c0_i32 = arith.constant 0 : i32
    %c0_i32_0 = arith.constant 0 : i32
    return %arg0, %c0_i32 : i32, i32
  }
  func.func @transform_1(%arg0: i32) -> (i32, i32) {
    %c0_i32 = arith.constant 0 : i32
    %c0_i32_0 = arith.constant 0 : i32
    %c0_i32_1 = arith.constant 0 : i32
    return %c0_i32, %c0_i32_0 : i32, i32
  }
  func.func @transform_2(%arg0: i32) -> (i32, i32) {
    %c0_i32 = arith.constant 0 : i32
    %c0_i32_0 = arith.constant 0 : i32
    %c0_i32_1 = arith.constant 0 : i32
    return %c0_i32, %c0_i32_0 : i32, i32
  }
  func.func @transform_3(%arg0: i32) -> (i32, i32) {
    %c0_i32 = arith.constant 0 : i32
    %c0_i32_0 = arith.constant 0 : i32
    %c0_i32_1 = arith.constant 0 : i32
    return %c0_i32, %c0_i32_0 : i32, i32
  }
  func.func @transform_4(%arg0: i32) -> (i32, i32) {
    %c0_i32 = arith.constant 0 : i32
    %c0_i32_0 = arith.constant 0 : i32
    %c0_i32_1 = arith.constant 0 : i32
    return %c0_i32, %c0_i32_0 : i32, i32
  }
  func.func @transform_5(%arg0: i32) -> (i32, i32) {
    %c0_i32 = arith.constant 0 : i32
    %c0_i32_0 = arith.constant 0 : i32
    %c0_i32_1 = arith.constant 0 : i32
    return %c0_i32, %c0_i32_0 : i32, i32
  }
  func.func @transform_6(%arg0: i32) -> (i32, i32) {
    %c0_i32 = arith.constant 0 : i32
    %c0_i32_0 = arith.constant 0 : i32
    %c0_i32_1 = arith.constant 0 : i32
    return %c0_i32, %c0_i32_0 : i32, i32
  }
  func.func @transform_7(%arg0: i32) -> (i32, i32) {
    %c0_i32 = arith.constant 0 : i32
    %c0_i32_0 = arith.constant 0 : i32
    return %arg0, %c0_i32 : i32, i32
  }
}

</mosaic_0001>

<llo_original>
// kernel: tpu_custom_call.1
$region0: #{tpu_custom_call.1}
  #allocation0 [shape = 'u32[]', space=smem, size = 0x4, offset = 0x4, fixed_abs, tag = 'smem constant byte address 0x4 - core index']
  #allocation1 [shape = 'u32[144,128]{1,0:T(1,128)}', space=vmem, size = 0x12000, scoped, tag = 'internal scratch']
  %s0 = inlined_call_operand.vmem [shape: f32[16,32], index: 0, kind: input, shape index: {}]
  %s1 = inlined_call_operand.vmem [shape: f32[32,64], index: 1, kind: input, shape index: {}]
  %s2 = inlined_call_operand.vmem [shape: f32[1,64], index: 2, kind: input, shape index: {}]
  %s3 = inlined_call_operand.vmem [shape: f32[64,32], index: 3, kind: input, shape index: {}]
  %s4 = inlined_call_operand.vmem [shape: f32[1,32], index: 4, kind: input, shape index: {}]
  %s5 = inlined_call_operand.vmem [shape: f32[32,32], index: 5, kind: input, shape index: {}]
  %s6 = inlined_call_operand.vmem [shape: f32[1,32], index: 6, kind: input, shape index: {}]
  %s7 = inlined_call_operand.hbm [shape: f32[16,32], index: 7, kind: output, shape index: {}]
  %s8 = sld [smem:[#allocation0]]
  $region61: #{tpu_custom_call.1} parent=0
    _
  %s10 = ssub.s32 1, %s8
  %s11 = scalar_select 0, %s10, %s8
  $region1: #{tpu_custom_call.1} parent=0
    #allocation2 [shape = 'u8[8192]{0}', space=vmem, size = 0x2000, scoped, tag = 'output window, operand 0']
    #allocation3 [shape = 's32[2]{0}', space=sflag, size = 0x8, scoped, tag = 'scoped memory for tpu_custom_call.1']
    %12 = vsyncpa [#allocation3], 0
    %s13 = scalar_lea.sflag [#allocation3], 1
    %14 = vsyncpa %s13, 0
    loop: start=0, step=1, limit=4
    $region2: #{tpu_custom_call.1} parent=1 // loop_pre_header
      _
    $region3: #{tpu_custom_call.1} parent=1 // loop_header
      %s16 = sphi 0, %s20
      %p17 = scmp.ge.s32.totalorder %s16, 4
      %s26 = sphi 0, %s28
      %s29 = sphi 0, %s26
      %s30 = sphi 0, %s29
      %s46 = sphi 0, %s30
      %s50 = sphi 0, %s50
      %s52 = sphi 0, %s50
      %s53 = sphi 0, %s52
      %s67 = sphi 0, %s53
      %s71 = sphi 0, %s71
      %s73 = sphi 0, %s71
      %s74 = sphi 0, %s73
      %s88 = sphi 0, %s74
      %s92 = sphi 0, %s92
      %s94 = sphi 0, %s92
      %s95 = sphi 0, %s94
      %s109 = sphi 0, %s95
      %s113 = sphi 0, %s113
      %s115 = sphi 0, %s113
      %s116 = sphi 0, %s115
      %s130 = sphi 0, %s116
      %s134 = sphi 0, %s134
      %s136 = sphi 0, %s134
      %s137 = sphi 0, %s136
      %s151 = sphi 0, %s137
      %s155 = sphi 0, %s155
      %s157 = sphi 0, %s155
      %s158 = sphi 0, %s157
      %s172 = sphi 0, %s158
      %s178 = sphi 0, %s180
      %s181 = sphi 0, %s178
      %s182 = sphi 0, %s181
      %s198 = sphi 0, %s182
    $region4: #{tpu_custom_call.1} parent=1 // loop_header_branch
      %19 = sbr.rel (%p17) target = $region8
    $region5: #{tpu_custom_call.1} parent=1 // loop_body
      %s21 = ssub.s32 %s16, 1
      %s22 = ssub.s32 %s16, 2
      %s23 = sadd.s32 %s16, 1
      %s24 = ssub.s32 %s16, %s23
      %p25 = scmp.eq.s32.totalorder %s24, 0
      %s27 = sadd.s32 %s26, 1
      %s28 = scalar_select %p25, %s26, %s27
      %p31 = pneg %p25
      %p32 = scmp.eq.s32.totalorder %s16, 1
      %p33 = por %p31, %p32
      %p34 = scmp.ne.s32.totalorder %s26, %s29
      %p35 = scmp.eq.s32.totalorder %s16, 0
      %p36 = por %p34, %p35
      %p37 = scmp.ne.s32.totalorder %s26, %s29
      %p38 = scmp.eq.s32.totalorder %s21, 1
      %p39 = por %p37, %p38
      %p40 = scmp.ne.s32.totalorder %s29, %s30
      %p41 = scmp.eq.s32.totalorder %s21, 0
      %p42 = por %p40, %p41
      %p43 = scmp.ne.s32.totalorder %s29, %s30
      %p44 = scmp.eq.s32.totalorder %s22, 1
      %p45 = por %p43, %p44
      %p47 = scmp.ne.s32.totalorder %s30, %s46
      %p48 = scmp.eq.s32.totalorder %s22, 0
      %p49 = por %p47, %p48
      %s51 = sadd.s32 %s50, 1
      %p54 = scmp.eq.s32.totalorder %s16, 1
      %p55 = scmp.ne.s32.totalorder %s50, %s52
      %p56 = scmp.eq.s32.totalorder %s16, 0
      %p57 = por %p55, %p56
      %p58 = scmp.ne.s32.totalorder %s50, %s52
      %p59 = scmp.eq.s32.totalorder %s21, 1
      %p60 = por %p58, %p59
      %p61 = scmp.ne.s32.totalorder %s52, %s53
      %p62 = scmp.eq.s32.totalorder %s21, 0
      %p63 = por %p61, %p62
      %p64 = scmp.ne.s32.totalorder %s52, %s53
      %p65 = scmp.eq.s32.totalorder %s22, 1
      %p66 = por %p64, %p65
      %p68 = scmp.ne.s32.totalorder %s53, %s67
      %p69 = scmp.eq.s32.totalorder %s22, 0
      %p70 = por %p68, %p69
      %s72 = sadd.s32 %s71, 1
      %p75 = scmp.eq.s32.totalorder %s16, 1
      %p76 = scmp.ne.s32.totalorder %s71, %s73
      %p77 = scmp.eq.s32.totalorder %s16, 0
      %p78 = por %p76, %p77
      %p79 = scmp.ne.s32.totalorder %s71, %s73
      %p80 = scmp.eq.s32.totalorder %s21, 1
      %p81 = por %p79, %p80
      %p82 = scmp.ne.s32.totalorder %s73, %s74
      %p83 = scmp.eq.s32.totalorder %s21, 0
      %p84 = por %p82, %p83
      %p85 = scmp.ne.s32.totalorder %s73, %s74
      %p86 = scmp.eq.s32.totalorder %s22, 1
      %p87 = por %p85, %p86
      %p89 = scmp.ne.s32.totalorder %s74, %s88
      %p90 = scmp.eq.s32.totalorder %s22, 0
      %p91 = por %p89, %p90
      %s93 = sadd.s32 %s92, 1
      %p96 = scmp.eq.s32.totalorder %s16, 1
      %p97 = scmp.ne.s32.totalorder %s92, %s94
      %p98 = scmp.eq.s32.totalorder %s16, 0
      %p99 = por %p97, %p98
      %p100 = scmp.ne.s32.totalorder %s92, %s94
      %p101 = scmp.eq.s32.totalorder %s21, 1
      %p102 = por %p100, %p101
      %p103 = scmp.ne.s32.totalorder %s94, %s95
      %p104 = scmp.eq.s32.totalorder %s21, 0
      %p105 = por %p103, %p104
      %p106 = scmp.ne.s32.totalorder %s94, %s95
      %p107 = scmp.eq.s32.totalorder %s22, 1
      %p108 = por %p106, %p107
      %p110 = scmp.ne.s32.totalorder %s95, %s109
      %p111 = scmp.eq.s32.totalorder %s22, 0
      %p112 = por %p110, %p111
      %s114 = sadd.s32 %s113, 1
      %p117 = scmp.eq.s32.totalorder %s16, 1
      %p118 = scmp.ne.s32.totalorder %s113, %s115
      %p119 = scmp.eq.s32.totalorder %s16, 0
      %p120 = por %p118, %p119
      %p121 = scmp.ne.s32.totalorder %s113, %s115
      %p122 = scmp.eq.s32.totalorder %s21, 1
      %p123 = por %p121, %p122
      %p124 = scmp.ne.s32.totalorder %s115, %s116
      %p125 = scmp.eq.s32.totalorder %s21, 0
      %p126 = por %p124, %p125
      %p127 = scmp.ne.s32.totalorder %s115, %s116
      %p128 = scmp.eq.s32.totalorder %s22, 1
      %p129 = por %p127, %p128
      %p131 = scmp.ne.s32.totalorder %s116, %s130
      %p132 = scmp.eq.s32.totalorder %s22, 0
      %p133 = por %p131, %p132
      %s135 = sadd.s32 %s134, 1
      %p138 = scmp.eq.s32.totalorder %s16, 1
      %p139 = scmp.ne.s32.totalorder %s134, %s136
      %p140 = scmp.eq.s32.totalorder %s16, 0
      %p141 = por %p139, %p140
      %p142 = scmp.ne.s32.totalorder %s134, %s136
      %p143 = scmp.eq.s32.totalorder %s21, 1
      %p144 = por %p142, %p143
      %p145 = scmp.ne.s32.totalorder %s136, %s137
      %p146 = scmp.eq.s32.totalorder %s21, 0
      %p147 = por %p145, %p146
      %p148 = scmp.ne.s32.totalorder %s136, %s137
      %p149 = scmp.eq.s32.totalorder %s22, 1
      %p150 = por %p148, %p149
      %p152 = scmp.ne.s32.totalorder %s137, %s151
      %p153 = scmp.eq.s32.totalorder %s22, 0
      %p154 = por %p152, %p153
      %s156 = sadd.s32 %s155, 1
      %p159 = scmp.eq.s32.totalorder %s16, 1
      %p160 = scmp.ne.s32.totalorder %s155, %s157
      %p161 = scmp.eq.s32.totalorder %s16, 0
      %p162 = por %p160, %p161
      %p163 = scmp.ne.s32.totalorder %s155, %s157
      %p164 = scmp.eq.s32.totalorder %s21, 1
      %p165 = por %p163, %p164
      %p166 = scmp.ne.s32.totalorder %s157, %s158
      %p167 = scmp.eq.s32.totalorder %s21, 0
      %p168 = por %p166, %p167
      %p169 = scmp.ne.s32.totalorder %s157, %s158
      %p170 = scmp.eq.s32.totalorder %s22, 1
      %p171 = por %p169, %p170
      %p173 = scmp.ne.s32.totalorder %s158, %s172
      %p174 = scmp.eq.s32.totalorder %s22, 0
      %p175 = por %p173, %p174
      %s176 = ssub.s32 %s16, %s23
      %p177 = scmp.eq.s32.totalorder %s176, 0
      %s179 = sadd.s32 %s178, 1
      %s180 = scalar_select %p177, %s178, %s179
      %p183 = pneg %p177
      %p184 = scmp.eq.s32.totalorder %s16, 1
      %p185 = por %p183, %p184
      %p186 = scmp.ne.s32.totalorder %s178, %s181
      %p187 = scmp.eq.s32.totalorder %s16, 0
      %p188 = por %p186, %p187
      %p189 = scmp.ne.s32.totalorder %s178, %s181
      %p190 = scmp.eq.s32.totalorder %s21, 1
      %p191 = por %p189, %p190
      %p192 = scmp.ne.s32.totalorder %s181, %s182
      %p193 = scmp.eq.s32.totalorder %s21, 0
      %p194 = por %p192, %p193
      %p195 = scmp.ne.s32.totalorder %s181, %s182
      %p196 = scmp.eq.s32.totalorder %s22, 1
      %p197 = por %p195, %p196
      %p199 = scmp.ne.s32.totalorder %s182, %s198
      %p200 = scmp.eq.s32.totalorder %s22, 0
      %p201 = por %p199, %p200
      %p202 = scmp.le.s32.totalorder 1, %s16
      %p203 = scmp.lt.s32.totalorder %s16, 3
      %p204 = pnand %p202, %p203
      %p205 = pneg %p204
      // Predicated region
      $region9: #{tpu_custom_call.1} parent=5 // pred_check
        _
      $region10: #{tpu_custom_call.1} parent=5 // pred_check_branch
        %207 = sbr.rel (%p204) target = $region12
      $region11: #{tpu_custom_call.1} parent=5 // pred_region
        %s208 = ssub.s32 %s16, 1
        // Predicated region
        $region13: #{tpu_custom_call.1} parent=11 // pred_check
          %p209 = pneg %p63
        $region14: #{tpu_custom_call.1} parent=11 // pred_check_branch
          %211 = sbr.rel (%p209) target = $region16
        $region15: #{tpu_custom_call.1} parent=11 // pred_region
          _
        $region16: #{tpu_custom_call.1} parent=11 // pred_fallthru
          _
        // Predicated region
        $region17: #{tpu_custom_call.1} parent=11 // pred_check
          %p212 = pneg %p84
        $region18: #{tpu_custom_call.1} parent=11 // pred_check_branch
          %214 = sbr.rel (%p212) target = $region20
        $region19: #{tpu_custom_call.1} parent=11 // pred_region
          _
        $region20: #{tpu_custom_call.1} parent=11 // pred_fallthru
          _
        // Predicated region
        $region21: #{tpu_custom_call.1} parent=11 // pred_check
          %p215 = pneg %p105
        $region22: #{tpu_custom_call.1} parent=11 // pred_check_branch
          %217 = sbr.rel (%p215) target = $region24
        $region23: #{tpu_custom_call.1} parent=11 // pred_region
          _
        $region24: #{tpu_custom_call.1} parent=11 // pred_fallthru
          _
        // Predicated region
        $region25: #{tpu_custom_call.1} parent=11 // pred_check
          %p218 = pneg %p126
        $region26: #{tpu_custom_call.1} parent=11 // pred_check_branch
          %220 = sbr.rel (%p218) target = $region28
        $region27: #{tpu_custom_call.1} parent=11 // pred_region
          _
        $region28: #{tpu_custom_call.1} parent=11 // pred_fallthru
          _
        // Predicated region
        $region29: #{tpu_custom_call.1} parent=11 // pred_check
          %p221 = pneg %p147
        $region30: #{tpu_custom_call.1} parent=11 // pred_check_branch
          %223 = sbr.rel (%p221) target = $region32
        $region31: #{tpu_custom_call.1} parent=11 // pred_region
          _
        $region32: #{tpu_custom_call.1} parent=11 // pred_fallthru
          _
        // Predicated region
        $region33: #{tpu_custom_call.1} parent=11 // pred_check
          %p224 = pneg %p168
        $region34: #{tpu_custom_call.1} parent=11 // pred_check_branch
          %226 = sbr.rel (%p224) target = $region36
        $region35: #{tpu_custom_call.1} parent=11 // pred_region
          _
        $region36: #{tpu_custom_call.1} parent=11 // pred_fallthru
          _
      $region12: #{tpu_custom_call.1} parent=5 // pred_fallthru
        _
      %p227 = scmp.lt.s32.totalorder %s16, 2
      // Predicated region
      $region37: #{tpu_custom_call.1} parent=5 // pred_check
        %p228 = pneg %p227
      $region38: #{tpu_custom_call.1} parent=5 // pred_check_branch
        %230 = sbr.rel (%p228) target = $region40
      $region39: #{tpu_custom_call.1} parent=5 // pred_region
        // Predicated region
        $region41: #{tpu_custom_call.1} parent=39 // pred_check
          %p231 = pneg %p36
        $region42: #{tpu_custom_call.1} parent=39 // pred_check_branch
          %233 = sbr.rel (%p231) target = $region44
        $region43: #{tpu_custom_call.1} parent=39 // pred_region
          %p234 = scmp.lt.s32.totalorder %s16, 1
          %s235 = scalar_select %p234, %s16, 1
          %s236 = smul.addr %s235, 8
          %s237 = scalar_lea.vmem %s0, %s236
        $region44: #{tpu_custom_call.1} parent=39 // pred_fallthru
          _
      $region40: #{tpu_custom_call.1} parent=5 // pred_fallthru
        _
      %p238 = scmp.le.s32.totalorder 1, %s16
      %p239 = scmp.lt.s32.totalorder %s16, 3
      %p240 = pnand %p238, %p239
      %p241 = pneg %p240
      // Predicated region
      $region45: #{tpu_custom_call.1} parent=5 // pred_check
        _
      $region46: #{tpu_custom_call.1} parent=5 // pred_check_branch
        %243 = sbr.rel (%p240) target = $region48
      $region47: #{tpu_custom_call.1} parent=5 // pred_region
        %s244 = ssub.s32 %s16, 1
        %p245 = scmp.lt.s32.totalorder %s21, 1
        %s246 = scalar_select %p245, %s21, 1
        %s247 = smul.addr %s246, 8
        %s248 = scalar_lea.vmem %s0, %s247
        %p249 = pneg %p42
        %p250 = pneg %p39
        %p251 = pneg %p63
        %p252 = pneg %p60
        %p253 = pneg %p84
        %p254 = pneg %p81
        %p255 = pneg %p105
        %p256 = pneg %p102
        %p257 = pneg %p126
        %p258 = pneg %p123
        %p259 = pneg %p147
        %p260 = pneg %p144
        %p261 = pneg %p168
        %p262 = pneg %p165
        %p263 = pneg %p194
        %p264 = pneg %p191
        %s265 = sand.u32 %s181, 1
        %s266 = scalar_lea.sflag [#allocation3], %s265
        %s267 = sand.u32 %s181, 1
        %s268 = smul.addr %s267, 8
        %s269 = scalar_lea.vmem [#allocation2], %s268
        %p270 = scmp.lt.s32.totalorder %s21, 1
        %s271 = scalar_select %p270, %s21, 1
        %s272 = smul.addr %s271, 8
        %s273 = scalar_lea.vmem %s0, %s272
        %v274 = vld [vmem:[%s273] sm:$0xff]
        %v275 = vld [vmem:[%s1] sm:$0xff]
        %v276 = vld [vmem:[%s1 + $0x8] sm:$0xff]
        %v277 = vld [vmem:[%s1 + $0x10] sm:$0xff]
        %v278 = vld [vmem:[%s1 + $0x18] sm:$0xff]
        %v279 = vld [vmem:[%s2] sm:$0x1]
        %v281 = vlaneseq
        %v282 = vshrl.u32 %v281, 7
        %v283 = vsub.s32 0, %v282
        %v284 = vrot.slane %v279, %v283
        %vm286 = vcmask 261120
        %v288 = vsel %vm286, %v274, 0
        %290 = vmatprep.subr.mxu0 0.0
        %291 = vmatpush1.msra.mxu0 0.0
        %292 = vmatprep.subr.mxu0 0.0
        %293 = vmatpush1.msra.mxu0 0.0
        %294 = vmatprep.subr.mxu0 0.0
        %295 = vmatpush1.msra.mxu0 0.0
        %296 = vmatprep.subr.mxu0 0.0
        %297 = vmatpush1.msra.mxu0 0.0
        %298 = vmatprep.subr.mxu0 0.0
        %299 = vmatpush1.msra.mxu0 0.0
        %300 = vmatprep.subr.mxu0 0.0
        %301 = vmatpush1.msra.mxu0 0.0
        %302 = vmatprep.subr.mxu0 0.0
        %303 = vmatpush1.msra.mxu0 0.0
        %304 = vmatprep.subr.mxu0 0.0
        %305 = vmatpush1.msra.mxu0 0.0
        %306 = vmatprep.subr.mxu0 0.0
        %307 = vmatpush1.msra.mxu0 0.0
        %308 = vmatprep.subr.mxu0 0.0
        %309 = vmatpush1.msra.mxu0 0.0
        %310 = vmatprep.subr.mxu0 0.0
        %311 = vmatpush1.msra.mxu0 0.0
        %312 = vmatprep.subr.mxu0 0.0
        %313 = vmatpush1.msra.mxu0 0.0
        %314 = vmatprep.subr.mxu0 0.0
        %315 = vmatpush1.msra.mxu0 %v278
        %316 = vmatprep.subr.mxu0 0.0
        %317 = vmatpush1.msra.mxu0 %v277
        %318 = vmatprep.subr.mxu0 0.0
        %319 = vmatpush1.msra.mxu0 %v276
        %320 = vmatprep.subr.mxu0 0.0
        %321 = vmatpush1.msra.mxu0 %v275
        %322 = vmatprep.subr.mxu0 0.0
        %323 = vmatpush2.msra.mxu0 0.0
        %324 = vmatprep.subr.mxu0 0.0
        %325 = vmatpush2.msra.mxu0 0.0
        %326 = vmatprep.subr.mxu0 0.0
        %327 = vmatpush2.msra.mxu0 0.0
        %328 = vmatprep.subr.mxu0 0.0
        %329 = vmatpush2.msra.mxu0 0.0
        %330 = vmatprep.subr.mxu0 0.0
        %331 = vmatpush2.msra.mxu0 0.0
        %332 = vmatprep.subr.mxu0 0.0
        %333 = vmatpush2.msra.mxu0 0.0
        %334 = vmatprep.subr.mxu0 0.0
        %335 = vmatpush2.msra.mxu0 0.0
        %336 = vmatprep.subr.mxu0 0.0
        %337 = vmatpush2.msra.mxu0 0.0
        %338 = vmatprep.subr.mxu0 0.0
        %339 = vmatpush2.msra.mxu0 0.0
        %340 = vmatprep.subr.mxu0 0.0
        %341 = vmatpush2.msra.mxu0 0.0
        %342 = vmatprep.subr.mxu0 0.0
        %343 = vmatpush2.msra.mxu0 0.0
        %344 = vmatprep.subr.mxu0 0.0
        %345 = vmatpush2.msra.mxu0 0.0
        %346 = vmatprep.subr.mxu0 0.0
        %347 = vmatpush2.msra.mxu0 0.0
        %348 = vmatprep.subr.mxu0 0.0
        %349 = vmatpush2.msra.mxu0 0.0
        %350 = vmatprep.subr.mxu0 0.0
        %351 = vmatpush2.msra.mxu0 0.0
        %352 = vmatprep.subr.mxu0 0.0
        %353 = vmatpush2.msra.mxu0 0.0
        %354 = vmatprep.mubr.f32.mxu0 0.0
        %355 = vmatmul.mubr.f32.gmra.mxu0 %v288
        %v356 = vpop.f32.mrf.mxu0
        %v357 = vadd.f32 %v284, %v356
        %v358 = vpop.f32.mrf.mxu0
        %359 = vdwg.mxu0
        %v360 = vmax.f32 %v357, 0.0
        %v361 = vld [vmem:[%s3] sm:$0xff]
        %v362 = vld [vmem:[%s3 + $0x8] sm:$0xff]
        %v363 = vld [vmem:[%s3 + $0x10] sm:$0xff]
        %v364 = vld [vmem:[%s3 + $0x18] sm:$0xff]
        %v365 = vld [vmem:[%s3 + $0x20] sm:$0xff]
        %v366 = vld [vmem:[%s3 + $0x28] sm:$0xff]
        %v367 = vld [vmem:[%s3 + $0x30] sm:$0xff]
        %v368 = vld [vmem:[%s3 + $0x38] sm:$0xff]
        %v369 = vld [vmem:[%s4] sm:$0x1]
        %v371 = vlaneseq
        %v372 = vshrl.u32 %v371, 7
        %v373 = vsub.s32 0, %v372
        %v374 = vrot.slane %v369, %v373
        %vm376 = vcmask 523264
        %v378 = vsel %vm376, %v360, 0
        %380 = vmatprep.subr.mxu0 0.0
        %381 = vmatpush1.msra.mxu0 0.0
        %382 = vmatprep.subr.mxu0 0.0
        %383 = vmatpush1.msra.mxu0 0.0
        %384 = vmatprep.subr.mxu0 0.0
        %385 = vmatpush1.msra.mxu0 0.0
        %386 = vmatprep.subr.mxu0 0.0
        %387 = vmatpush1.msra.mxu0 0.0
        %388 = vmatprep.subr.mxu0 0.0
        %389 = vmatpush1.msra.mxu0 0.0
        %390 = vmatprep.subr.mxu0 0.0
        %391 = vmatpush1.msra.mxu0 0.0
        %392 = vmatprep.subr.mxu0 0.0
        %393 = vmatpush1.msra.mxu0 0.0
        %394 = vmatprep.subr.mxu0 0.0
        %395 = vmatpush1.msra.mxu0 0.0
        %396 = vmatprep.subr.mxu0 0.0
        %397 = vmatpush1.msra.mxu0 %v368
        %398 = vmatprep.subr.mxu0 0.0
        %399 = vmatpush1.msra.mxu0 %v367
        %400 = vmatprep.subr.mxu0 0.0
        %401 = vmatpush1.msra.mxu0 %v366
        %402 = vmatprep.subr.mxu0 0.0
        %403 = vmatpush1.msra.mxu0 %v365
        %404 = vmatprep.subr.mxu0 0.0
        %405 = vmatpush1.msra.mxu0 %v364
        %406 = vmatprep.subr.mxu0 0.0
        %407 = vmatpush1.msra.mxu0 %v363
        %408 = vmatprep.subr.mxu0 0.0
        %409 = vmatpush1.msra.mxu0 %v362
        %410 = vmatprep.subr.mxu0 0.0
        %411 = vmatpush1.msra.mxu0 %v361
        %412 = vmatprep.subr.mxu0 0.0
        %413 = vmatpush2.msra.mxu0 0.0
        %414 = vmatprep.subr.mxu0 0.0
        %415 = vmatpush2.msra.mxu0 0.0
        %416 = vmatprep.subr.mxu0 0.0
        %417 = vmatpush2.msra.mxu0 0.0
        %418 = vmatprep.subr.mxu0 0.0
        %419 = vmatpush2.msra.mxu0 0.0
        %420 = vmatprep.subr.mxu0 0.0
        %421 = vmatpush2.msra.mxu0 0.0
        %422 = vmatprep.subr.mxu0 0.0
        %423 = vmatpush2.msra.mxu0 0.0
        %424 = vmatprep.subr.mxu0 0.0
        %425 = vmatpush2.msra.mxu0 0.0
        %426 = vmatprep.subr.mxu0 0.0
        %427 = vmatpush2.msra.mxu0 0.0
        %428 = vmatprep.subr.mxu0 0.0
        %429 = vmatpush2.msra.mxu0 0.0
        %430 = vmatprep.subr.mxu0 0.0
        %431 = vmatpush2.msra.mxu0 0.0
        %432 = vmatprep.subr.mxu0 0.0
        %433 = vmatpush2.msra.mxu0 0.0
        %434 = vmatprep.subr.mxu0 0.0
        %435 = vmatpush2.msra.mxu0 0.0
        %436 = vmatprep.subr.mxu0 0.0
        %437 = vmatpush2.msra.mxu0 0.0
        %438 = vmatprep.subr.mxu0 0.0
        %439 = vmatpush2.msra.mxu0 0.0
        %440 = vmatprep.subr.mxu0 0.0
        %441 = vmatpush2.msra.mxu0 0.0
        %442 = vmatprep.subr.mxu0 0.0
        %443 = vmatpush2.msra.mxu0 0.0
        %444 = vmatprep.mubr.f32.mxu0 0.0
        %445 = vmatmul.mubr.f32.gmra.mxu0 %v378
        %v446 = vpop.f32.mrf.mxu0
        %v447 = vadd.f32 %v374, %v446
        %v448 = vpop.f32.mrf.mxu0
        %449 = vdwg.mxu0
        %v450 = vmax.f32 %v447, 0.0
        %v451 = vld [vmem:[%s5] sm:$0xff]
        %v452 = vld [vmem:[%s5 + $0x8] sm:$0xff]
        %v453 = vld [vmem:[%s5 + $0x10] sm:$0xff]
        %v454 = vld [vmem:[%s5 + $0x18] sm:$0xff]
        %v455 = vld [vmem:[%s6] sm:$0x1]
        %v457 = vlaneseq
        %v458 = vshrl.u32 %v457, 7
        %v459 = vsub.s32 0, %v458
        %v460 = vrot.slane %v455, %v459
        %v463 = vsel %vm286, %v450, 0
        %465 = vmatprep.subr.mxu0 0.0
        %466 = vmatpush1.msra.mxu0 0.0
        %467 = vmatprep.subr.mxu0 0.0
        %468 = vmatpush1.msra.mxu0 0.0
        %469 = vmatprep.subr.mxu0 0.0
        %470 = vmatpush1.msra.mxu0 0.0
        %471 = vmatprep.subr.mxu0 0.0
        %472 = vmatpush1.msra.mxu0 0.0
        %473 = vmatprep.subr.mxu0 0.0
        %474 = vmatpush1.msra.mxu0 0.0
        %475 = vmatprep.subr.mxu0 0.0
        %476 = vmatpush1.msra.mxu0 0.0
        %477 = vmatprep.subr.mxu0 0.0
        %478 = vmatpush1.msra.mxu0 0.0
        %479 = vmatprep.subr.mxu0 0.0
        %480 = vmatpush1.msra.mxu0 0.0
        %481 = vmatprep.subr.mxu0 0.0
        %482 = vmatpush1.msra.mxu0 0.0
        %483 = vmatprep.subr.mxu0 0.0
        %484 = vmatpush1.msra.mxu0 0.0
        %485 = vmatprep.subr.mxu0 0.0
        %486 = vmatpush1.msra.mxu0 0.0
        %487 = vmatprep.subr.mxu0 0.0
        %488 = vmatpush1.msra.mxu0 0.0
        %489 = vmatprep.subr.mxu0 0.0
        %490 = vmatpush1.msra.mxu0 %v454
        %491 = vmatprep.subr.mxu0 0.0
        %492 = vmatpush1.msra.mxu0 %v453
        %493 = vmatprep.subr.mxu0 0.0
        %494 = vmatpush1.msra.mxu0 %v452
        %495 = vmatprep.subr.mxu0 0.0
        %496 = vmatpush1.msra.mxu0 %v451
        %497 = vmatprep.subr.mxu0 0.0
        %498 = vmatpush2.msra.mxu0 0.0
        %499 = vmatprep.subr.mxu0 0.0
        %500 = vmatpush2.msra.mxu0 0.0
        %501 = vmatprep.subr.mxu0 0.0
        %502 = vmatpush2.msra.mxu0 0.0
        %503 = vmatprep.subr.mxu0 0.0
        %504 = vmatpush2.msra.mxu0 0.0
        %505 = vmatprep.subr.mxu0 0.0
        %506 = vmatpush2.msra.mxu0 0.0
        %507 = vmatprep.subr.mxu0 0.0
        %508 = vmatpush2.msra.mxu0 0.0
        %509 = vmatprep.subr.mxu0 0.0
        %510 = vmatpush2.msra.mxu0 0.0
        %511 = vmatprep.subr.mxu0 0.0
        %512 = vmatpush2.msra.mxu0 0.0
        %513 = vmatprep.subr.mxu0 0.0
        %514 = vmatpush2.msra.mxu0 0.0
        %515 = vmatprep.subr.mxu0 0.0
        %516 = vmatpush2.msra.mxu0 0.0
        %517 = vmatprep.subr.mxu0 0.0
        %518 = vmatpush2.msra.mxu0 0.0
        %519 = vmatprep.subr.mxu0 0.0
        %520 = vmatpush2.msra.mxu0 0.0
        %521 = vmatprep.subr.mxu0 0.0
        %522 = vmatpush2.msra.mxu0 0.0
        %523 = vmatprep.subr.mxu0 0.0
        %524 = vmatpush2.msra.mxu0 0.0
        %525 = vmatprep.subr.mxu0 0.0
        %526 = vmatpush2.msra.mxu0 0.0
        %527 = vmatprep.subr.mxu0 0.0
        %528 = vmatpush2.msra.mxu0 0.0
        %529 = vmatprep.mubr.f32.mxu0 0.0
        %530 = vmatmul.mubr.f32.gmra.mxu0 %v463
        %v531 = vpop.f32.mrf.mxu0
        %v532 = vadd.f32 %v460, %v531
        %v533 = vpop.f32.mrf.mxu0
        %534 = vdwg.mxu0
        %535 = vst.msk [vmem:[%s269] sm:$0xff] %vm286, %v532
        %s536 = sand.u32 %s181, 1
        %s537 = scalar_lea.sflag [#allocation3], %s536
        %s538 = sand.u32 %s181, 1
        %s539 = smul.addr %s538, 8
        %s540 = scalar_lea.vmem [#allocation2], %s539
        // Predicated region
        $region49: #{tpu_custom_call.1} parent=47 // pred_check
          %p541 = pneg %p191
        $region50: #{tpu_custom_call.1} parent=47 // pred_check_branch
          %543 = sbr.rel (%p541) target = $region52
        $region51: #{tpu_custom_call.1} parent=47 // pred_region
          %s545 = ssub.s32 128, 128
          %546 = vsyncadd %s537, %s545
          %s547 = smul.addr %s21, 128
          %s548 = scalar_lea.hbm %s7, %s547
          %s550 = sshll.u32 %s540, 4
          %s551 = int_to_ptr.vmem [resolvable:$true] %s550
          %553 = dma.vmem_to_hbm [thread:$0]  %s551, 128, %s548, %s537
        $region52: #{tpu_custom_call.1} parent=47 // pred_fallthru
          _
      $region48: #{tpu_custom_call.1} parent=5 // pred_fallthru
        _
      %p554 = scmp.le.s32.totalorder 2, %s16
      // Predicated region
      $region53: #{tpu_custom_call.1} parent=5 // pred_check
        %p555 = pneg %p554
      $region54: #{tpu_custom_call.1} parent=5 // pred_check_branch
        %557 = sbr.rel (%p555) target = $region56
      $region55: #{tpu_custom_call.1} parent=5 // pred_region
        %s558 = ssub.s32 %s16, 2
        // Predicated region
        $region57: #{tpu_custom_call.1} parent=55 // pred_check
          %p559 = pneg %p197
        $region58: #{tpu_custom_call.1} parent=55 // pred_check_branch
          %561 = sbr.rel (%p559) target = $region60
        $region59: #{tpu_custom_call.1} parent=55 // pred_region
          %s562 = sand.u32 %s182, 1
          %s563 = scalar_lea.sflag [#allocation3], %s562
          %s564 = sand.u32 %s182, 1
          %s565 = smul.addr %s564, 8
          %s566 = scalar_lea.vmem [#allocation2], %s565
          %567 = dma.done %s563, 128
        $region60: #{tpu_custom_call.1} parent=55 // pred_fallthru
          _
      $region56: #{tpu_custom_call.1} parent=5 // pred_fallthru
        _
    $region6: #{tpu_custom_call.1} parent=1 // loop_footer
      %s20 = sadd.s32 1, %s16
    $region7: #{tpu_custom_call.1} parent=1 // loop_footer_branch
      %15 = sbr.rel target = $region3
    $region8: #{tpu_custom_call.1} parent=1 // loop_exit
      _
    %568 = vsyncpa [#allocation3], 1
    %s569 = scalar_lea.sflag [#allocation3], 1
    %570 = vsyncpa %s569, 1

</llo_original>
